<compile_context>
chip_gen: v6e
topology: v6e:2x2x1
jax: 0.10.0
libtpu: 0.0.40
codegen_flags: <defaults>
</compile_context>

<pallas_src>
import jax
import jax.numpy as jnp
import numpy as np
from jax.experimental import pallas as pl
from jax.experimental.pallas import tpu as pltpu


def _identity_kernel(t_ref, o_ref):
    # forward(): return self.t  -> copy the current tile through.
    o_ref[...] = t_ref[...]


def _as_2d(t):
    """View t as (rows, cols) with the original last dim on the lane axis."""
    if t.ndim == 0:
        return t.reshape(1, 1)
    if t.ndim == 1:
        return t.reshape(1, t.shape[0])
    return t.reshape(-1, t.shape[-1])


def tensor_module_forward(t, *, tile_bytes_budget=8 << 20):
    """Materializing Pallas copy of the TensorModule parameter.

    Returns a new buffer with the same shape/dtype/values as `t`. Any-rank,
    any-shape parameters are supported (no alignment requirement).
    """
    orig_shape = t.shape
    t2 = _as_2d(t)
    rows, cols = t2.shape

    itemsize = jnp.dtype(t.dtype).itemsize
    bytes_per_row = cols * itemsize
    total_bytes = rows * bytes_per_row
    # Full sublane packing: 8 rows for 4-byte, 16 for 2-byte, 32 for 1-byte.
    sublane = max(8, 32 // max(itemsize, 1))

    if total_bytes <= tile_bytes_budget or rows <= sublane:
        # Single full-array block: one DMA in, one DMA out, no edge masking.
        block_rows = rows
        grid = (1,)
    else:
        # Largest sublane-aligned row count whose (block_rows, cols) tile fits
        # the per-buffer VMEM budget (double-buffered in + out ~= 4x this).
        block_rows = (tile_bytes_budget // bytes_per_row) // sublane * sublane
        block_rows = max(sublane, block_rows)
        block_rows = min(block_rows, rows)
        grid = (pl.cdiv(rows, block_rows),)

    out2 = pl.pallas_call(
        _identity_kernel,
        out_shape=jax.ShapeDtypeStruct((rows, cols), t.dtype),
        grid=grid,
        # Lane axis is always the full last dim (lane-dense output slab).
        in_specs=[pl.BlockSpec((block_rows, cols), lambda i: (i, 0))],
        out_specs=pl.BlockSpec((block_rows, cols), lambda i: (i, 0)),
        compiler_params=pltpu.CompilerParams(
            dimension_semantics=("parallel",),
            # 4 x 8 MiB buffers + headroom; safe on v5e/v6e (128 MiB) and
            # v7x (64 MiB physical).
            vmem_limit_bytes=48 << 20,
        ),
    )(t2)
    return out2.reshape(orig_shape)


class TensorModuleJax:
    """JAX counterpart of the PyTorch TensorModule: wraps a single tensor."""

    def __init__(self, t):
        self.t = t  # the "parameter"

    def __call__(self, *args, materialize=False, **kwargs):
        # forward(*args, **kwargs) -> self.t  (inputs are ignored).
        # Default: zero-copy, exactly like PyTorch returning the Parameter.
        if not materialize:
            return self.t
        # Optional materialized copy via the Pallas kernel.
        return tensor_module_forward(self.t)


if __name__ == "__main__":
    key = jax.random.PRNGKey(0)
    k0, k1, k2 = jax.random.split(key, 3)

    # Small, deterministic "parameter" tensors covering:
    #  (a) lane/sublane-aligned f32, (b) odd-shaped 3-D f32 (single-block path),
    #  (c) bf16 (sublane-packing path).
    params = [
        jax.random.normal(k0, (16, 256), dtype=jnp.float32),
        jax.random.normal(k1, (3, 5, 20), dtype=jnp.float32),
        jax.random.normal(k2, (2, 4, 32), dtype=jnp.float32).astype(jnp.bfloat16),
    ]

    dummy_x = jnp.zeros((2, 4), dtype=jnp.float32)

    for t in params:
        module = TensorModuleJax(t)

        # Hot path: zero-copy return of the parameter (matches PyTorch exactly).
        out_fast = module(dummy_x, some_kwarg=123)
        assert out_fast is t

        # Kernel path: materialized copy through the Pallas kernel.
        out = module(dummy_x, some_kwarg=123, materialize=True)
        out = jax.block_until_ready(out)

        assert out.shape == t.shape and out.dtype == t.dtype
        np.testing.assert_array_equal(np.asarray(out), np.asarray(t))

    print("KERNEL_OK")
</pallas_src>

<mosaic_0001>
module attributes {stable_mosaic.version = 11 : i64} {
  func.func @_identity_kernel(%arg0: i32, %arg1: memref<16x256xf32, #tpu.memory_space<vmem>>, %arg2: memref<16x256xf32, #tpu.memory_space<vmem>>) attributes {dimension_semantics = [#tpu.dimension_semantics<parallel>], iteration_bounds = array<i64: 1>, scalar_prefetch = 0 : i64, scratch_operands = 0 : i64, tpu.core_type = #tpu.core_type<tc>, window_params = [{transform_indices = @transform_0, window_bounds = array<i64: 16, 256>}, {transform_indices = @transform_1, window_bounds = array<i64: 16, 256>}]} {
    %c0 = arith.constant 0 : index
    %c0_0 = arith.constant 0 : index
    %0 = vector.load %arg1[%c0, %c0_0] : memref<16x256xf32, #tpu.memory_space<vmem>>, vector<16x256xf32>
    %c0_1 = arith.constant 0 : index
    %c0_2 = arith.constant 0 : index
    %1 = vector.load %arg2[%c0_1, %c0_2] : memref<16x256xf32, #tpu.memory_space<vmem>>, vector<16x256xf32>
    tpu.vector_store %arg2[%c0_1, %c0_2], %0 {strides = array<i32>} : memref<16x256xf32, #tpu.memory_space<vmem>>, vector<16x256xf32>,
    return
  }
  func.func @transform_0(%arg0: i32) -> (i32, i32) {
    %c0_i32 = arith.constant 0 : i32
    %c0_i32_0 = arith.constant 0 : i32
    return %arg0, %c0_i32 : i32, i32
  }
  func.func @transform_1(%arg0: i32) -> (i32, i32) {
    %c0_i32 = arith.constant 0 : i32
    %c0_i32_0 = arith.constant 0 : i32
    return %arg0, %c0_i32 : i32, i32
  }
}

</mosaic_0001>

<llo_original>
// kernel: tpu_custom_call.1
$region0: #{tpu_custom_call.1}
  #allocation0 [shape = 'u32[]', space=smem, size = 0x4, offset = 0x4, fixed_abs, tag = 'smem constant byte address 0x4 - core index']
  #allocation1 [shape = 'u32[144,128]{1,0:T(1,128)}', space=vmem, size = 0x12000, scoped, tag = 'internal scratch']
  %s0 = inlined_call_operand.hbm [shape: f32[16,256], index: 0, kind: input, shape index: {}]
  %s1 = inlined_call_operand.hbm [shape: f32[16,256], index: 1, kind: output, shape index: {}]
  %s2 = sld [smem:[#allocation0]]
  $region18: #{tpu_custom_call.1} parent=0
    _
  %s4 = ssub.s32 1, %s2
  %s5 = scalar_select 0, %s4, %s2
  $region1: #{tpu_custom_call.1} parent=0
    #allocation2 [shape = 'u8[16384]{0}', space=vmem, size = 0x4000, scoped, tag = 'input window, operand 0, single buffered']
    #allocation3 [shape = 's32[1]{0}', space=sflag, size = 0x4, scoped, tag = 'scoped memory for tpu_custom_call.1']
    #allocation4 [shape = 's32[1]{0}', space=sflag, size = 0x4, scoped, tag = 'scoped memory for tpu_custom_call.1']
    #allocation5 [shape = 'u8[16384]{0}', space=vmem, size = 0x4000, scoped, tag = 'output window, operand 0, single buffered']
    %6 = vsyncpa [#allocation3], 0
    %7 = vsyncpa [#allocation4], 0
    // Predicated region
    $region2: #{tpu_custom_call.1} parent=1 // pred_check
      _
    $region3: #{tpu_custom_call.1} parent=1 // pred_check_branch
      %9 = sbr.rel (0) target = $region5
    $region4: #{tpu_custom_call.1} parent=1 // pred_region
      %s11 = ssub.s32 512, 512
      %12 = vsyncadd [#allocation3], %s11
      %s13 = sshll.u32 [#allocation2], 4
      %s14 = int_to_ptr.vmem [resolvable:$true] %s13
      %19 = dma.hbm_to_vmem [thread:$0]  %s0, 512, %s14, [#allocation3], 256, 256, 16
    $region5: #{tpu_custom_call.1} parent=1 // pred_fallthru
      _
    // Predicated region
    $region6: #{tpu_custom_call.1} parent=1 // pred_check
      _
    $region7: #{tpu_custom_call.1} parent=1 // pred_check_branch
      %21 = sbr.rel (0) target = $region9
    $region8: #{tpu_custom_call.1} parent=1 // pred_region
      %22 = dma.done [#allocation3], 512
    $region9: #{tpu_custom_call.1} parent=1 // pred_fallthru
      _
    %v23 = vld [vmem:[#allocation2] sm:$0xff]
    %v24 = vld [vmem:[#allocation2 + $0x8] sm:$0xff]
    %v25 = vld [vmem:[#allocation2 + $0x10] sm:$0xff]
    %v26 = vld [vmem:[#allocation2 + $0x18] sm:$0xff]
    %27 = vst [vmem:[#allocation5] sm:$0xff] %v23
    %28 = vst [vmem:[#allocation5 + $0x8] sm:$0xff] %v24
    %29 = vst [vmem:[#allocation5 + $0x10] sm:$0xff] %v25
    %30 = vst [vmem:[#allocation5 + $0x18] sm:$0xff] %v26
    // Predicated region
    $region10: #{tpu_custom_call.1} parent=1 // pred_check
      _
    $region11: #{tpu_custom_call.1} parent=1 // pred_check_branch
      %32 = sbr.rel (0) target = $region13
    $region12: #{tpu_custom_call.1} parent=1 // pred_region
      %s34 = ssub.s32 512, 512
      %35 = vsyncadd [#allocation4], %s34
      %s36 = sshll.u32 [#allocation5], 4
      %s37 = int_to_ptr.vmem [resolvable:$true] %s36
      %42 = dma.vmem_to_hbm [thread:$0]  %s37, 512, %s1, [#allocation4], 256, 256, 16
    $region13: #{tpu_custom_call.1} parent=1 // pred_fallthru
      _
    // Predicated region
    $region14: #{tpu_custom_call.1} parent=1 // pred_check
      _
    $region15: #{tpu_custom_call.1} parent=1 // pred_check_branch
      %44 = sbr.rel (0) target = $region17
    $region16: #{tpu_custom_call.1} parent=1 // pred_region
      %45 = dma.done [#allocation4], 512
    $region17: #{tpu_custom_call.1} parent=1 // pred_fallthru
      _
    %46 = vsyncpa [#allocation3], 1
    %47 = vsyncpa [#allocation4], 1

</llo_original>
